<compile_context>
chip_gen: v5e
topology: v5e:2x2
jax: 0.10.0
libtpu: 0.0.40
codegen_flags: <defaults>
</compile_context>

<pallas_src>
import functools

import jax
import jax.numpy as jnp
from jax.experimental import pallas as pl
from jax.experimental.pallas import tpu as pltpu

BN_EPS = 1e-5
LANE = 128


def _round_up(n, m=LANE):
    return ((n + m - 1) // m) * m


def _bn_train_onepass(h, gamma, beta):
    # Training-mode BatchNorm1d: biased batch variance, one traversal (sum & sumsq).
    inv_n = 1.0 / h.shape[0]
    mean = jnp.sum(h, axis=0, keepdims=True) * inv_n
    mean_sq = jnp.sum(h * h, axis=0, keepdims=True) * inv_n
    var = jnp.maximum(mean_sq - mean * mean, 0.0)
    return (h - mean) * jax.lax.rsqrt(var + BN_EPS) * gamma + beta


def concat_attention3_kernel(x_ref, w1_ref, w2_ref, vec_ref, o_ref):
    x = x_ref[...]                       # [B, 128] f32, lane-dense concat (padded lanes 0)
    vec = vec_ref[...]                   # [8, 128] f32 packed params
    g1, be1 = vec[0:1, :], vec[1:2, :]
    g2, be2 = vec[2:3, :], vec[3:4, :]
    smax_mask = vec[4:5, :]              # 0 on valid lanes, -1e30 on padded lanes

    # ---- attention_layer: Linear (bias cancelled by BN) -> BatchNorm1d -> ReLU -> Softmax ----
    h = jnp.dot(x.astype(jnp.bfloat16), w1_ref[...],
                preferred_element_type=jnp.float32)                 # [B, 128]
    h = _bn_train_onepass(h, g1, be1)
    h = jnp.maximum(h, 0.0)                                         # ReLU
    h = h + smax_mask                                               # mask padded lanes

    m = jnp.max(h, axis=1, keepdims=True)
    e = jnp.exp(h - m)
    den = jnp.sum(e, axis=1, keepdims=True)

    # ---- gate: attended = softmax(h) * concatenated_features (padded lanes stay 0) ----
    att = (e / den) * x                                             # [B, 128]

    # ---- reduce: Linear (bias cancelled by BN) -> BatchNorm1d -> ReLU ----
    r = jnp.dot(att.astype(jnp.bfloat16), w2_ref[...],
                preferred_element_type=jnp.float32)                 # [B, 128]
    r = _bn_train_onepass(r, g2, be2)
    o_ref[...] = jnp.maximum(r, 0.0)                                # lane-dense store


def make_params(key, input_dim, attention_dim):
    # Mirrors the PyTorch module's parameters / default init (weights stored [in, out]).
    k1, k2, k3, k4 = jax.random.split(key, 4)
    bound = 1.0 / jnp.sqrt(input_dim)
    return {
        "w1": jax.random.uniform(k1, (input_dim, input_dim), jnp.float32, -bound, bound),
        "b1": jax.random.uniform(k2, (1, input_dim), jnp.float32, -bound, bound),
        "g1": jnp.ones((1, input_dim), jnp.float32),
        "be1": jnp.zeros((1, input_dim), jnp.float32),
        "w2": jax.random.uniform(k3, (input_dim, attention_dim), jnp.float32, -bound, bound),
        "b2": jax.random.uniform(k4, (1, attention_dim), jnp.float32, -bound, bound),
        "g2": jnp.ones((1, attention_dim), jnp.float32),
        "be2": jnp.zeros((1, attention_dim), jnp.float32),
    }


def prepare_kernel_params(params, input_dim, attention_dim):
    # One-time packing: pad both weights to the 128-lane width and cast to bf16;
    # pack gamma/beta for both BN layers and the softmax additive mask into one
    # [8, 128] f32 array (single VMEM tile / single DMA). Linear biases dropped
    # (cancelled exactly by training-mode BN mean subtraction).
    dp = _round_up(input_dim)
    ap = _round_up(attention_dim)

    w1 = (jnp.zeros((dp, dp), jnp.float32)
          .at[:input_dim, :input_dim].set(params["w1"])).astype(jnp.bfloat16)
    w2 = (jnp.zeros((dp, ap), jnp.float32)
          .at[:input_dim, :attention_dim].set(params["w2"])).astype(jnp.bfloat16)

    vec = jnp.zeros((8, dp), jnp.float32)
    vec = vec.at[0, :input_dim].set(params["g1"][0])
    vec = vec.at[1, :input_dim].set(params["be1"][0])
    vec = vec.at[2, :attention_dim].set(params["g2"][0])
    vec = vec.at[3, :attention_dim].set(params["be2"][0])
    vec = vec.at[4].set(jnp.where(jnp.arange(dp) < input_dim, 0.0, -1e30))

    return {"w1": w1, "w2": w2, "vec": vec}


@functools.partial(jax.jit, static_argnames=("d_valid", "a_valid"))
def concat_attention3(text, image, caption, kparams, *, d_valid, a_valid):
    b = text.shape[0]
    dp = kparams["w1"].shape[0]
    ap = kparams["w2"].shape[1]

    # torch.cat fused into the wrapper: lane-dense zero-padded [B, 128] f32 slab
    # (XLA fuses concat+pad; avoids in-kernel selection matmuls / HBM round trips).
    x = jnp.concatenate((text, image, caption), axis=1)
    x = jnp.pad(x, ((0, 0), (0, dp - d_valid)))

    vmem = pl.BlockSpec(memory_space=pltpu.MemorySpace.VMEM)
    cost = pl.CostEstimate(
        flops=2 * b * dp * dp + 2 * b * dp * ap,
        transcendentals=b * dp,
        bytes_accessed=(b * dp * 4                       # x
                        + dp * dp * 2 + dp * ap * 2      # w1, w2 (bf16)
                        + 8 * dp * 4                     # packed vectors
                        + b * ap * 4),                   # output
    )

    out_padded = pl.pallas_call(
        concat_attention3_kernel,
        out_shape=jax.ShapeDtypeStruct((b, ap), jnp.float32),
        in_specs=[vmem, vmem, vmem, vmem],
        out_specs=vmem,
        cost_estimate=cost,
    )(x, kparams["w1"], kparams["w2"], kparams["vec"])

    return out_padded[:, :a_valid]


def reference_forward(text, image, caption, params, matmul_dtype=jnp.float32):
    # Pure-JAX mirror of the PyTorch forward (training-mode BatchNorm, biases included).
    x = jnp.concatenate((text, image, caption), axis=1)

    def mm(a, w):
        return jnp.dot(a.astype(matmul_dtype), w.astype(matmul_dtype),
                       preferred_element_type=jnp.float32)

    def bn(h, gamma, beta):
        mean = jnp.mean(h, axis=0, keepdims=True)
        var = jnp.mean((h - mean) ** 2, axis=0, keepdims=True)
        return (h - mean) * jax.lax.rsqrt(var + BN_EPS) * gamma + beta

    h = mm(x, params["w1"]) + params["b1"]
    h = bn(h, params["g1"], params["be1"])
    h = jnp.maximum(h, 0.0)
    attn = jax.nn.softmax(h, axis=1)
    att = attn * x
    r = mm(att, params["w2"]) + params["b2"]
    r = bn(r, params["g2"], params["be2"])
    return jnp.maximum(r, 0.0)


if __name__ == "__main__":
    # Shapes consistent with the module: text [B,16], image [B,16], caption [B,32]
    #   -> input_dim = 64, attention_dim = 32.
    B, Dt, Di, Dc, A = 8, 16, 16, 32, 32
    input_dim = Dt + Di + Dc

    key = jax.random.PRNGKey(0)
    kt, ki, kc, kp = jax.random.split(key, 4)
    text = jax.random.normal(kt, (B, Dt), jnp.float32)
    image = jax.random.normal(ki, (B, Di), jnp.float32)
    caption = jax.random.normal(kc, (B, Dc), jnp.float32)

    params = make_params(kp, input_dim, A)
    kparams = prepare_kernel_params(params, input_dim, A)

    out = concat_attention3(text, image, caption, kparams, d_valid=input_dim, a_valid=A)
    out = jax.block_until_ready(out)
    assert out.shape == (B, A), out.shape

    # Precision-matched check (same bf16-matmul / f32-accumulate math as the kernel).
    ref_mixed = reference_forward(text, image, caption, params, matmul_dtype=jnp.bfloat16)
    assert jnp.allclose(out, ref_mixed, atol=3e-2, rtol=3e-2), \
        float(jnp.max(jnp.abs(out - ref_mixed)))

    # Sanity check vs. exact f32 module semantics (loose: bf16 matmuls).
    ref_f32 = reference_forward(text, image, caption, params, matmul_dtype=jnp.float32)
    assert jnp.allclose(out, ref_f32, atol=2e-1, rtol=2e-1), \
        float(jnp.max(jnp.abs(out - ref_f32)))

    print("KERNEL_OK")
</pallas_src>

<mosaic_0001>
module attributes {stable_mosaic.version = 11 : i64} {
  func.func @concat_attention3_kernel(%arg0: memref<8x128xf32, #tpu.memory_space<vmem>>, %arg1: memref<128x128xbf16, #tpu.memory_space<vmem>>, %arg2: memref<128x128xbf16, #tpu.memory_space<vmem>>, %arg3: memref<8x128xf32, #tpu.memory_space<vmem>>, %arg4: memref<8x128xf32, #tpu.memory_space<vmem>>) attributes {dimension_semantics = [], scalar_prefetch = 0 : i64, scratch_operands = 0 : i64, tpu.core_type = #tpu.core_type<tc>} {
    %c0 = arith.constant 0 : index
    %c0_0 = arith.constant 0 : index
    %0 = vector.load %arg0[%c0, %c0_0] : memref<8x128xf32, #tpu.memory_space<vmem>>, vector<8x128xf32>
    %c0_1 = arith.constant 0 : index
    %c0_2 = arith.constant 0 : index
    %1 = vector.load %arg3[%c0_1, %c0_2] : memref<8x128xf32, #tpu.memory_space<vmem>>, vector<8x128xf32>
    %2 = vector.extract_strided_slice %1 {offsets = [0, 0], sizes = [1, 128], strides = [1, 1]} : vector<8x128xf32> to vector<1x128xf32>
    %3 = vector.extract_strided_slice %1 {offsets = [1, 0], sizes = [1, 128], strides = [1, 1]} : vector<8x128xf32> to vector<1x128xf32>
    %4 = vector.extract_strided_slice %1 {offsets = [2, 0], sizes = [1, 128], strides = [1, 1]} : vector<8x128xf32> to vector<1x128xf32>
    %5 = vector.extract_strided_slice %1 {offsets = [3, 0], sizes = [1, 128], strides = [1, 1]} : vector<8x128xf32> to vector<1x128xf32>
    %6 = vector.extract_strided_slice %1 {offsets = [4, 0], sizes = [1, 128], strides = [1, 1]} : vector<8x128xf32> to vector<1x128xf32>
    %7 = arith.truncf %0 : vector<8x128xf32> to vector<8x128xbf16>
    %c0_3 = arith.constant 0 : index
    %c0_4 = arith.constant 0 : index
    %8 = vector.load %arg1[%c0_3, %c0_4] : memref<128x128xbf16, #tpu.memory_space<vmem>>, vector<128x128xbf16>
    %cst = arith.constant dense<0.000000e+00> : vector<8x128xf32>
    %9 = tpu.matmul %7, %8, %cst {dimension_numbers = #tpu.dot_dimension_numbers<[1], [0], [0], [1], [0, 0, 1, 1], [], []>} : vector<8x128xbf16>, vector<128x128xbf16>, vector<8x128xf32> -> vector<8x128xf32>
    %cst_5 = arith.constant dense<0.000000e+00> : vector<128xf32>
    %10 = vector.multi_reduction <add>, %9, %cst_5 [0] : vector<8x128xf32> to vector<128xf32>
    %11 = vector.shape_cast %10 : vector<128xf32> to vector<1x128xf32>
    %cst_6 = arith.constant 1.250000e-01 : f32
    %12 = vector.broadcast %cst_6 : f32 to vector<1x128xf32>
    %13 = arith.mulf %11, %12 : vector<1x128xf32>
    %14 = arith.mulf %9, %9 : vector<8x128xf32>
    %cst_7 = arith.constant dense<0.000000e+00> : vector<128xf32>
    %15 = vector.multi_reduction <add>, %14, %cst_7 [0] : vector<8x128xf32> to vector<128xf32>
    %16 = vector.shape_cast %15 : vector<128xf32> to vector<1x128xf32>
    %cst_8 = arith.constant 1.250000e-01 : f32
    %17 = vector.broadcast %cst_8 : f32 to vector<1x128xf32>
    %18 = arith.mulf %16, %17 : vector<1x128xf32>
    %19 = arith.mulf %13, %13 : vector<1x128xf32>
    %20 = arith.subf %18, %19 : vector<1x128xf32>
    %cst_9 = arith.constant 0.000000e+00 : f32
    %21 = vector.broadcast %cst_9 : f32 to vector<1x128xf32>
    %22 = arith.maximumf %20, %21 : vector<1x128xf32>
    %23 = vector.broadcast %13 : vector<1x128xf32> to vector<8x128xf32>
    %24 = arith.subf %9, %23 : vector<8x128xf32>
    %cst_10 = arith.constant 9.99999974E-6 : f32
    %25 = vector.broadcast %cst_10 : f32 to vector<1x128xf32>
    %26 = arith.addf %22, %25 : vector<1x128xf32>
    %27 = math.rsqrt %26 : vector<1x128xf32>
    %28 = vector.broadcast %27 : vector<1x128xf32> to vector<8x128xf32>
    %29 = arith.mulf %24, %28 : vector<8x128xf32>
    %30 = vector.broadcast %2 : vector<1x128xf32> to vector<8x128xf32>
    %31 = arith.mulf %29, %30 : vector<8x128xf32>
    %32 = vector.broadcast %3 : vector<1x128xf32> to vector<8x128xf32>
    %33 = arith.addf %31, %32 : vector<8x128xf32>
    %cst_11 = arith.constant 0.000000e+00 : f32
    %34 = vector.broadcast %cst_11 : f32 to vector<8x128xf32>
    %35 = arith.maximumf %33, %34 : vector<8x128xf32>
    %36 = vector.broadcast %6 : vector<1x128xf32> to vector<8x128xf32>
    %37 = arith.addf %35, %36 : vector<8x128xf32>
    %cst_12 = arith.constant dense<0xFF800000> : vector<8xf32>
    %38 = vector.multi_reduction <maximumf>, %37, %cst_12 [1] : vector<8x128xf32> to vector<8xf32>
    %39 = vector.shape_cast %38 : vector<8xf32> to vector<8x1xf32>
    %40 = vector.broadcast %39 : vector<8x1xf32> to vector<8x128xf32>
    %41 = arith.subf %37, %40 : vector<8x128xf32>
    %42 = math.exp %41 : vector<8x128xf32>
    %cst_13 = arith.constant dense<0.000000e+00> : vector<8xf32>
    %43 = vector.multi_reduction <add>, %42, %cst_13 [1] : vector<8x128xf32> to vector<8xf32>
    %44 = vector.shape_cast %43 : vector<8xf32> to vector<8x1xf32>
    %45 = vector.broadcast %44 : vector<8x1xf32> to vector<8x128xf32>
    %46 = arith.divf %42, %45 : vector<8x128xf32>
    %47 = arith.mulf %46, %0 : vector<8x128xf32>
    %48 = arith.truncf %47 : vector<8x128xf32> to vector<8x128xbf16>
    %c0_14 = arith.constant 0 : index
    %c0_15 = arith.constant 0 : index
    %49 = vector.load %arg2[%c0_14, %c0_15] : memref<128x128xbf16, #tpu.memory_space<vmem>>, vector<128x128xbf16>
    %cst_16 = arith.constant dense<0.000000e+00> : vector<8x128xf32>
    %50 = tpu.matmul %48, %49, %cst_16 {dimension_numbers = #tpu.dot_dimension_numbers<[1], [0], [0], [1], [0, 0, 1, 1], [], []>} : vector<8x128xbf16>, vector<128x128xbf16>, vector<8x128xf32> -> vector<8x128xf32>
    %cst_17 = arith.constant dense<0.000000e+00> : vector<128xf32>
    %51 = vector.multi_reduction <add>, %50, %cst_17 [0] : vector<8x128xf32> to vector<128xf32>
    %52 = vector.shape_cast %51 : vector<128xf32> to vector<1x128xf32>
    %cst_18 = arith.constant 1.250000e-01 : f32
    %53 = vector.broadcast %cst_18 : f32 to vector<1x128xf32>
    %54 = arith.mulf %52, %53 : vector<1x128xf32>
    %55 = arith.mulf %50, %50 : vector<8x128xf32>
    %cst_19 = arith.constant dense<0.000000e+00> : vector<128xf32>
    %56 = vector.multi_reduction <add>, %55, %cst_19 [0] : vector<8x128xf32> to vector<128xf32>
    %57 = vector.shape_cast %56 : vector<128xf32> to vector<1x128xf32>
    %cst_20 = arith.constant 1.250000e-01 : f32
    %58 = vector.broadcast %cst_20 : f32 to vector<1x128xf32>
    %59 = arith.mulf %57, %58 : vector<1x128xf32>
    %60 = arith.mulf %54, %54 : vector<1x128xf32>
    %61 = arith.subf %59, %60 : vector<1x128xf32>
    %cst_21 = arith.constant 0.000000e+00 : f32
    %62 = vector.broadcast %cst_21 : f32 to vector<1x128xf32>
    %63 = arith.maximumf %61, %62 : vector<1x128xf32>
    %64 = vector.broadcast %54 : vector<1x128xf32> to vector<8x128xf32>
    %65 = arith.subf %50, %64 : vector<8x128xf32>
    %cst_22 = arith.constant 9.99999974E-6 : f32
    %66 = vector.broadcast %cst_22 : f32 to vector<1x128xf32>
    %67 = arith.addf %63, %66 : vector<1x128xf32>
    %68 = math.rsqrt %67 : vector<1x128xf32>
    %69 = vector.broadcast %68 : vector<1x128xf32> to vector<8x128xf32>
    %70 = arith.mulf %65, %69 : vector<8x128xf32>
    %71 = vector.broadcast %4 : vector<1x128xf32> to vector<8x128xf32>
    %72 = arith.mulf %70, %71 : vector<8x128xf32>
    %73 = vector.broadcast %5 : vector<1x128xf32> to vector<8x128xf32>
    %74 = arith.addf %72, %73 : vector<8x128xf32>
    %cst_23 = arith.constant 0.000000e+00 : f32
    %75 = vector.broadcast %cst_23 : f32 to vector<8x128xf32>
    %76 = arith.maximumf %74, %75 : vector<8x128xf32>
    %c0_24 = arith.constant 0 : index
    %c0_25 = arith.constant 0 : index
    %77 = vector.load %arg4[%c0_24, %c0_25] : memref<8x128xf32, #tpu.memory_space<vmem>>, vector<8x128xf32>
    tpu.vector_store %arg4[%c0_24, %c0_25], %76 {strides = array<i32>} : memref<8x128xf32, #tpu.memory_space<vmem>>, vector<8x128xf32>,
    return
  }
}

</mosaic_0001>

<llo_original>
// kernel: concat_attention3.1
$region0: #{concat_attention3.1}
  #allocation0 [shape = 'u32[]', space=smem, size = 0x4, offset = 0x4, fixed_abs, tag = 'smem constant byte address 0x4 - core index']
  #allocation1 [shape = 'u32[72,128]{1,0:T(1,128)}', space=vmem, size = 0x9000, scoped, tag = 'internal scratch']
  %s0 = inlined_call_operand.vmem [shape: f32[8,128], index: 0, kind: input, shape index: {}]
  %s1 = inlined_call_operand.hbm [shape: bf16[128,128], index: 1, kind: input, shape index: {}]
  %s2 = inlined_call_operand.hbm [shape: bf16[128,128], index: 2, kind: input, shape index: {}]
  %s3 = inlined_call_operand.vmem [shape: f32[8,128], index: 3, kind: input, shape index: {}]
  %s4 = inlined_call_operand.hbm [shape: f32[8,128], index: 4, kind: output, shape index: {}]
  %s5 = sld [smem:[#allocation0]]
  $region34: #{concat_attention3.1} parent=0
    _
  %s7 = ssub.s32 1, %s5
  %s8 = scalar_select 0, %s7, %s5
  $region1: #{concat_attention3.1} parent=0
    #allocation2 [shape = 'u8[32768]{0}', space=vmem, size = 0x8000, scoped, tag = 'input window, operand 1, single buffered']
    #allocation3 [shape = 's32[1]{0}', space=sflag, size = 0x4, scoped, tag = 'scoped memory for concat_attention3.1']
    #allocation4 [shape = 's32[1]{0}', space=sflag, size = 0x4, scoped, tag = 'scoped memory for concat_attention3.1']
    #allocation5 [shape = 'u8[32768]{0}', space=vmem, size = 0x8000, scoped, tag = 'input window, operand 2, single buffered']
    #allocation6 [shape = 's32[1]{0}', space=sflag, size = 0x4, scoped, tag = 'scoped memory for concat_attention3.1']
    #allocation7 [shape = 'u8[4096]{0}', space=vmem, size = 0x1000, scoped, tag = 'output window, operand 0, single buffered']
    %9 = vsyncpa [#allocation3], 0
    %10 = vsyncpa [#allocation6], 0
    %11 = vsyncpa [#allocation4], 0
    // Predicated region
    $region2: #{concat_attention3.1} parent=1 // pred_check
      _
    $region3: #{concat_attention3.1} parent=1 // pred_check_branch
      %13 = sbr.rel (0) target = $region5
    $region4: #{concat_attention3.1} parent=1 // pred_region
      _
    $region5: #{concat_attention3.1} parent=1 // pred_fallthru
      _
    // Predicated region
    $region6: #{concat_attention3.1} parent=1 // pred_check
      _
    $region7: #{concat_attention3.1} parent=1 // pred_check_branch
      %15 = sbr.rel (0) target = $region9
    $region8: #{concat_attention3.1} parent=1 // pred_region
      %17 = vsyncadd [#allocation3], 0
      %s18 = sshll.u32 %s1, 4
      %s19 = int_to_ptr.hbm [resolvable:$true] %s18
      %s20 = sshll.u32 [#allocation2], 4
      %s21 = int_to_ptr.vmem [resolvable:$true] %s20
      %26 = dma.hbm_to_vmem [thread:$0]  %s19, 1024, %s21, [#allocation3], 64, 64, 4
    $region9: #{concat_attention3.1} parent=1 // pred_fallthru
      _
    // Predicated region
    $region10: #{concat_attention3.1} parent=1 // pred_check
      _
    $region11: #{concat_attention3.1} parent=1 // pred_check_branch
      %28 = sbr.rel (0) target = $region13
    $region12: #{concat_attention3.1} parent=1 // pred_region
      %30 = vsyncadd [#allocation6], 0
      %s31 = sshll.u32 %s2, 4
      %s32 = int_to_ptr.hbm [resolvable:$true] %s31
      %s33 = sshll.u32 [#allocation5], 4
      %s34 = int_to_ptr.vmem [resolvable:$true] %s33
      %39 = dma.hbm_to_vmem [thread:$0]  %s32, 1024, %s34, [#allocation6], 64, 64, 4
    $region13: #{concat_attention3.1} parent=1 // pred_fallthru
      _
    // Predicated region
    $region14: #{concat_attention3.1} parent=1 // pred_check
      _
    $region15: #{concat_attention3.1} parent=1 // pred_check_branch
      %41 = sbr.rel (0) target = $region17
    $region16: #{concat_attention3.1} parent=1 // pred_region
      _
    $region17: #{concat_attention3.1} parent=1 // pred_fallthru
      _
    // Predicated region
    $region18: #{concat_attention3.1} parent=1 // pred_check
      _
    $region19: #{concat_attention3.1} parent=1 // pred_check_branch
      %43 = sbr.rel (0) target = $region21
    $region20: #{concat_attention3.1} parent=1 // pred_region
      %45 = dma.done [#allocation3], 1024
    $region21: #{concat_attention3.1} parent=1 // pred_fallthru
      _
    // Predicated region
    $region22: #{concat_attention3.1} parent=1 // pred_check
      _
    $region23: #{concat_attention3.1} parent=1 // pred_check_branch
      %47 = sbr.rel (0) target = $region25
    $region24: #{concat_attention3.1} parent=1 // pred_region
      %49 = dma.done [#allocation6], 1024
    $region25: #{concat_attention3.1} parent=1 // pred_fallthru
      _
    %v50 = vld [vmem:[%s0] sm:$0xff]
    %v51 = vld [vmem:[%s3] sm:$0xff]
    %v52 = vpack.c.bf16 %v50, %v50
    %v53 = vld [vmem:[#allocation2] sm:$0xf]
    %v54 = vld [vmem:[#allocation2 + $0x4] sm:$0xf]
    %v55 = vld [vmem:[#allocation2 + $0x8] sm:$0xf]
    %v56 = vld [vmem:[#allocation2 + $0xc] sm:$0xf]
    %v57 = vld [vmem:[#allocation2 + $0x10] sm:$0xf]
    %v58 = vld [vmem:[#allocation2 + $0x14] sm:$0xf]
    %v59 = vld [vmem:[#allocation2 + $0x18] sm:$0xf]
    %v60 = vld [vmem:[#allocation2 + $0x1c] sm:$0xf]
    %v61 = vld [vmem:[#allocation2 + $0x20] sm:$0xf]
    %v62 = vld [vmem:[#allocation2 + $0x24] sm:$0xf]
    %v63 = vld [vmem:[#allocation2 + $0x28] sm:$0xf]
    %v64 = vld [vmem:[#allocation2 + $0x2c] sm:$0xf]
    %v65 = vld [vmem:[#allocation2 + $0x30] sm:$0xf]
    %v66 = vld [vmem:[#allocation2 + $0x34] sm:$0xf]
    %v67 = vld [vmem:[#allocation2 + $0x38] sm:$0xf]
    %v68 = vld [vmem:[#allocation2 + $0x3c] sm:$0xf]
    %v85 = vunpack.c.l.b16 %v53
    %v86 = vunpack.c.l.b16 %v54
    %v87 = vunpack.c.l.b16 %v55
    %v88 = vunpack.c.l.b16 %v56
    %v89 = vunpack.c.l.b16 %v57
    %v90 = vunpack.c.l.b16 %v58
    %v91 = vunpack.c.l.b16 %v59
    %v92 = vunpack.c.l.b16 %v60
    %v93 = vunpack.c.l.b16 %v61
    %v94 = vunpack.c.l.b16 %v62
    %v95 = vunpack.c.l.b16 %v63
    %v96 = vunpack.c.l.b16 %v64
    %v97 = vunpack.c.l.b16 %v65
    %v98 = vunpack.c.l.b16 %v66
    %v99 = vunpack.c.l.b16 %v67
    %v100 = vunpack.c.l.b16 %v68
    %v101 = vpack.c.b16 %v86, %v85
    %v102 = vpack.c.b16 %v88, %v87
    %v103 = vpack.c.b16 %v90, %v89
    %v104 = vpack.c.b16 %v92, %v91
    %v105 = vpack.c.b16 %v94, %v93
    %v106 = vpack.c.b16 %v96, %v95
    %v107 = vpack.c.b16 %v98, %v97
    %v108 = vpack.c.b16 %v100, %v99
    %117 = vmatpush.bf16.msra.mxu0 %v108
    %118 = vmatpush.bf16.msra.mxu0 %v107
    %119 = vmatpush.bf16.msra.mxu0 %v106
    %120 = vmatpush.bf16.msra.mxu0 %v105
    %121 = vmatpush.bf16.msra.mxu0 %v104
    %122 = vmatpush.bf16.msra.mxu0 %v103
    %123 = vmatpush.bf16.msra.mxu0 %v102
    %124 = vmatpush.bf16.msra.mxu0 %v101
    %125 = vmatmul.bf16.gmra.mxu0 %v52
    %v126 = vpop.f32.mrf.mxu0
    %v127 = vadd.f32 0.0, %v126
    %v128 = vpop.f32.mrf.mxu0
    %129 = vdwg.mxu0
    %v130 = vrot.slane %v127, 4
    %v131 = vadd.f32 %v127, %v130
    %v132 = vrot.slane %v131, 2
    %v133 = vadd.f32 %v131, %v132
    %v134 = vrot.slane %v133, 1
    %v135 = vadd.f32 %v133, %v134
    %v136 = vmul.f32 %v135, 0.125
    %v137 = vmul.f32 %v127, %v127
    %v138 = vrot.slane %v137, 4
    %v139 = vadd.f32 %v137, %v138
    %v140 = vrot.slane %v139, 2
    %v141 = vadd.f32 %v139, %v140
    %v142 = vrot.slane %v141, 1
    %v143 = vadd.f32 %v141, %v142
    %v144 = vmul.f32 %v143, 0.125
    %v145 = vmul.f32 %v136, %v136
    %v146 = vsub.f32 %v144, %v145
    %v147 = vmax.f32 %v146, 0.0
    %v148 = vsub.f32 %v127, %v136
    %v149 = vadd.f32 %v147, 1e-05
    %v150 = vrsqrt.pop %v149
    %v151 = vmul.f32 %v150, %v149
    %v152 = vmul.f32 %v151, %v150
    %v153 = vmul.f32 0.5, %v152
    %v154 = vsub.f32 1.5, %v153
    %v155 = vmul.f32 %v150, %v154
    %vm156 = vweird.f32 %v149
    %vm157 = vweird.f32 %v150
    %vm158 = vmor %vm156, %vm157
    %v159 = vsel %vm158, %v150, %v155
    %v160 = vmul.f32 %v148, %v159
    %v161 = vperm.slane %v51, 0
    %v162 = vmul.f32 %v160, %v161
    %v163 = vperm.slane %v51, 1
    %v164 = vadd.f32 %v162, %v163
    %v165 = vmax.f32 %v164, 0.0
    %v166 = vperm.slane %v51, 4
    %v167 = vadd.f32 %v165, %v166
    %168 = vmax.xlane.f32.xlu0 %v167
    %v169 = vpop.xlane.xlu0 %168
    %v170 = vsub.f32 %v167, %v169
    %v171 = vmul.f32 %v170, 1.442695
    %v172 = vpow.pop %v171
    %173 = vadd.xlane.f32.xlu0 %v172
    %v174 = vpop.xlane.xlu0 %173
    %v175 = vrcp.pop %v174
    %v176 = vmul.f32 %v174, %v175
    %v177 = vsub.f32 1.0, %v176
    %v178 = vmul.f32 %v175, %v177
    %v179 = vadd.f32 %v175, %v178
    %vm180 = vweird.f32 %v174
    %vm181 = vweird.f32 %v175
    %vm182 = vmor %vm180, %vm181
    %v183 = vsel %vm182, %v175, %v179
    %v184 = vand.u32 2147483647, %v174
    %vm185 = vcmp.eq.f32.partialorder %v184, 8.507059e+37
    %v186 = vand.u32 %v174, 2147483648
    %v187 = vor.u32 1.1754944e-38, %v186
    %v188 = vsel %vm185, %v187, %v183
    %v189 = vmul.f32 %v172, %v188
    %v190 = vmul.f32 %v189, %v50
    %v191 = vpack.c.bf16 %v190, %v190
    %v192 = vld [vmem:[#allocation5] sm:$0xf]
    %v193 = vld [vmem:[#allocation5 + $0x4] sm:$0xf]
    %v194 = vld [vmem:[#allocation5 + $0x8] sm:$0xf]
    %v195 = vld [vmem:[#allocation5 + $0xc] sm:$0xf]
    %v196 = vld [vmem:[#allocation5 + $0x10] sm:$0xf]
    %v197 = vld [vmem:[#allocation5 + $0x14] sm:$0xf]
    %v198 = vld [vmem:[#allocation5 + $0x18] sm:$0xf]
    %v199 = vld [vmem:[#allocation5 + $0x1c] sm:$0xf]
    %v200 = vld [vmem:[#allocation5 + $0x20] sm:$0xf]
    %v201 = vld [vmem:[#allocation5 + $0x24] sm:$0xf]
    %v202 = vld [vmem:[#allocation5 + $0x28] sm:$0xf]
    %v203 = vld [vmem:[#allocation5 + $0x2c] sm:$0xf]
    %v204 = vld [vmem:[#allocation5 + $0x30] sm:$0xf]
    %v205 = vld [vmem:[#allocation5 + $0x34] sm:$0xf]
    %v206 = vld [vmem:[#allocation5 + $0x38] sm:$0xf]
    %v207 = vld [vmem:[#allocation5 + $0x3c] sm:$0xf]
    %v224 = vunpack.c.l.b16 %v192
    %v225 = vunpack.c.l.b16 %v193
    %v226 = vunpack.c.l.b16 %v194
    %v227 = vunpack.c.l.b16 %v195
    %v228 = vunpack.c.l.b16 %v196
    %v229 = vunpack.c.l.b16 %v197
    %v230 = vunpack.c.l.b16 %v198
    %v231 = vunpack.c.l.b16 %v199
    %v232 = vunpack.c.l.b16 %v200
    %v233 = vunpack.c.l.b16 %v201
    %v234 = vunpack.c.l.b16 %v202
    %v235 = vunpack.c.l.b16 %v203
    %v236 = vunpack.c.l.b16 %v204
    %v237 = vunpack.c.l.b16 %v205
    %v238 = vunpack.c.l.b16 %v206
    %v239 = vunpack.c.l.b16 %v207
    %v240 = vpack.c.b16 %v225, %v224
    %v241 = vpack.c.b16 %v227, %v226
    %v242 = vpack.c.b16 %v229, %v228
    %v243 = vpack.c.b16 %v231, %v230
    %v244 = vpack.c.b16 %v233, %v232
    %v245 = vpack.c.b16 %v235, %v234
    %v246 = vpack.c.b16 %v237, %v236
    %v247 = vpack.c.b16 %v239, %v238
    %256 = vmatpush.bf16.msra.mxu0 %v247
    %257 = vmatpush.bf16.msra.mxu0 %v246
    %258 = vmatpush.bf16.msra.mxu0 %v245
    %259 = vmatpush.bf16.msra.mxu0 %v244
    %260 = vmatpush.bf16.msra.mxu0 %v243
    %261 = vmatpush.bf16.msra.mxu0 %v242
    %262 = vmatpush.bf16.msra.mxu0 %v241
    %263 = vmatpush.bf16.msra.mxu0 %v240
    %264 = vmatmul.bf16.gmra.mxu0 %v191
    %v265 = vpop.f32.mrf.mxu0
    %v266 = vadd.f32 0.0, %v265
    %v267 = vpop.f32.mrf.mxu0
    %268 = vdwg.mxu0
    %v269 = vrot.slane %v266, 4
    %v270 = vadd.f32 %v266, %v269
    %v271 = vrot.slane %v270, 2
    %v272 = vadd.f32 %v270, %v271
    %v273 = vrot.slane %v272, 1
    %v274 = vadd.f32 %v272, %v273
    %v275 = vmul.f32 %v274, 0.125
    %v276 = vmul.f32 %v266, %v266
    %v277 = vrot.slane %v276, 4
    %v278 = vadd.f32 %v276, %v277
    %v279 = vrot.slane %v278, 2
    %v280 = vadd.f32 %v278, %v279
    %v281 = vrot.slane %v280, 1
    %v282 = vadd.f32 %v280, %v281
    %v283 = vmul.f32 %v282, 0.125
    %v284 = vmul.f32 %v275, %v275
    %v285 = vsub.f32 %v283, %v284
    %v286 = vmax.f32 %v285, 0.0
    %v287 = vsub.f32 %v266, %v275
    %v288 = vadd.f32 %v286, 1e-05
    %v289 = vrsqrt.pop %v288
    %v290 = vmul.f32 %v289, %v288
    %v291 = vmul.f32 %v290, %v289
    %v292 = vmul.f32 0.5, %v291
    %v293 = vsub.f32 1.5, %v292
    %v294 = vmul.f32 %v289, %v293
    %vm295 = vweird.f32 %v288
    %vm296 = vweird.f32 %v289
    %vm297 = vmor %vm295, %vm296
    %v298 = vsel %vm297, %v289, %v294
    %v299 = vmul.f32 %v287, %v298
    %v300 = vperm.slane %v51, 2
    %v301 = vmul.f32 %v299, %v300
    %v302 = vperm.slane %v51, 3
    %v303 = vadd.f32 %v301, %v302
    %v304 = vmax.f32 %v303, 0.0
    %305 = vst [vmem:[#allocation7] sm:$0xff] %v304
    // Predicated region
    $region26: #{concat_attention3.1} parent=1 // pred_check
      _
    $region27: #{concat_attention3.1} parent=1 // pred_check_branch
      %307 = sbr.rel (0) target = $region29
    $region28: #{concat_attention3.1} parent=1 // pred_region
      %309 = vsyncadd [#allocation4], 0
      %s311 = sshll.u32 [#allocation7], 4
      %s312 = int_to_ptr.vmem [resolvable:$true] %s311
      %s313 = sshll.u32 %s4, 4
      %s314 = int_to_ptr.hbm [resolvable:$true] %s313
      %316 = dma.vmem_to_hbm [thread:$0]  %s312, 128, %s314, [#allocation4]
    $region29: #{concat_attention3.1} parent=1 // pred_fallthru
      _
    // Predicated region
    $region30: #{concat_attention3.1} parent=1 // pred_check
      _
    $region31: #{concat_attention3.1} parent=1 // pred_check_branch
      %318 = sbr.rel (0) target = $region33
    $region32: #{concat_attention3.1} parent=1 // pred_region
      %320 = dma.done [#allocation4], 128
    $region33: #{concat_attention3.1} parent=1 // pred_fallthru
      _
    %321 = vsyncpa [#allocation3], 1
    %322 = vsyncpa [#allocation6], 1
    %323 = vsyncpa [#allocation4], 1

</llo_original>
